<compile_context>
chip_gen: v5e
topology: v5e:2x2
jax: 0.10.0
libtpu: 0.0.40
codegen_flags: <defaults>
</compile_context>

<pallas_src>
import math

import jax
import jax.numpy as jnp
from jax.experimental import pallas as pl
from jax.experimental.pallas import tpu as pltpu


def _round_up(x, m):
    return (x + m - 1) // m * m


def _gcn_kernel(x_ref, w_ref, adj_ref, bias_ref, out_ref, support_ref, acc_ref):
    i = pl.program_id(1)          # output-row tile of adj / output
    k = pl.program_id(2)          # reduction tile (adj columns == support rows)
    nk = pl.num_programs(2)

    # Fill the per-batch support cache (x @ w) exactly once, on the first
    # output-row tile.  Support rows for reduction tile k only need the
    # matching x row block, which is exactly what this grid step has in VMEM.
    @pl.when(i == 0)
    def _():
        sup = jnp.dot(x_ref[0], w_ref[0], preferred_element_type=jnp.float32)
        support_ref[k] = sup.astype(support_ref.dtype)

    @pl.when(k == 0)
    def _():
        acc_ref[...] = jnp.zeros_like(acc_ref)

    # adj tile (rows i, cols k) @ cached support block k, f32 accumulation.
    acc_ref[...] += jnp.dot(adj_ref[0], support_ref[k],
                            preferred_element_type=jnp.float32)

    @pl.when(k == nk - 1)
    def _():
        out_ref[0] = (acc_ref[...] + bias_ref[0]).astype(out_ref.dtype)


def graph_convolution(x, weight, adj, bias, *, tile=128,
                      compute_dtype=jnp.bfloat16):
    """x: [B, N, Fin], weight: [B, Fin, Fout], adj: [B, N, N], bias: [B, Fout]."""
    B, N, Fin = x.shape
    Fout = weight.shape[-1]
    assert weight.shape == (B, Fin, Fout)
    assert adj.shape == (B, N, N)
    assert bias.shape == (B, Fout)
    assert tile % 128 == 0, "keep MXU/lane tiles at multiples of 128"

    out_dtype = x.dtype

    # Zero-pad to lane- / tile-aligned shapes.  Zero padding is exact: padded
    # x rows / Fin cols / Fout cols / adj rows+cols contribute exact zeros.
    N_p = _round_up(N, tile)
    Fin_p = _round_up(Fin, 128)
    Fout_p = _round_up(Fout, 128)

    x_p = jnp.pad(x, ((0, 0), (0, N_p - N), (0, Fin_p - Fin))).astype(compute_dtype)
    w_p = jnp.pad(weight, ((0, 0), (0, Fin_p - Fin), (0, Fout_p - Fout))).astype(compute_dtype)
    adj_p = jnp.pad(adj, ((0, 0), (0, N_p - N), (0, N_p - N))).astype(compute_dtype)
    bias_p = jnp.pad(bias, ((0, 0), (0, Fout_p - Fout))).astype(jnp.float32)
    bias_p = bias_p.reshape(B, 1, Fout_p)            # lane-dense, well-formed block

    ni = N_p // tile          # output-row tiles
    nk = N_p // tile          # reduction tiles

    flops = 2 * B * (N_p * Fin_p * Fout_p + N_p * N_p * Fout_p)
    bytes_accessed = (x_p.size * x_p.dtype.itemsize
                      + w_p.size * w_p.dtype.itemsize
                      + adj_p.size * adj_p.dtype.itemsize
                      + bias_p.size * bias_p.dtype.itemsize
                      + B * N_p * Fout_p * jnp.dtype(out_dtype).itemsize)

    out_p = pl.pallas_call(
        _gcn_kernel,
        out_shape=jax.ShapeDtypeStruct((B, N_p, Fout_p), out_dtype),
        grid_spec=pltpu.PrefetchScalarGridSpec(
            num_scalar_prefetch=0,
            grid=(B, ni, nk),
            in_specs=[
                # x row block matching the current reduction tile (used at i==0).
                pl.BlockSpec((1, tile, Fin_p), lambda b, i, k: (b, k, 0)),
                # full per-batch weight (small: Fin_p x Fout_p).
                pl.BlockSpec((1, Fin_p, Fout_p), lambda b, i, k: (b, 0, 0)),
                # adj tile: output rows i, reduction columns k.
                pl.BlockSpec((1, tile, tile), lambda b, i, k: (b, i, k)),
                # bias, lane-dense (B, 1, Fout_p).
                pl.BlockSpec((1, 1, Fout_p), lambda b, i, k: (b, 0, 0)),
            ],
            # Output block stays resident across the reduction axis k.
            out_specs=pl.BlockSpec((1, tile, Fout_p), lambda b, i, k: (b, i, 0)),
            scratch_shapes=[
                pltpu.VMEM((nk, tile, Fout_p), compute_dtype),  # cached support = x @ w
                pltpu.VMEM((tile, Fout_p), jnp.float32),        # f32 accumulator
            ],
        ),
        compiler_params=pltpu.CompilerParams(
            dimension_semantics=("parallel", "arbitrary", "arbitrary"),
        ),
        cost_estimate=pl.CostEstimate(
            flops=flops, transcendentals=0, bytes_accessed=bytes_accessed),
    )(x_p, w_p, adj_p, bias_p)

    # Strip padding back to the module's output shape.
    return out_p[:, :N, :Fout]


if __name__ == "__main__":
    # Small shapes consistent with the module: batch=2, nodes=16,
    # in_features=32, out_features=32.
    B, N, Fin, Fout = 2, 16, 32, 32

    key = jax.random.PRNGKey(0)
    k_x, k_adj, k_w, k_b = jax.random.split(key, 4)

    # Parameter init matching reset_parameters(): uniform(-stdv, stdv),
    # stdv = 1/sqrt(out_features).
    stdv = 1.0 / math.sqrt(Fout)
    weight = jax.random.uniform(
        k_w, (B, Fin, Fout), dtype=jnp.float32, minval=-stdv, maxval=stdv
    )
    bias = jax.random.uniform(
        k_b, (B, Fout), dtype=jnp.float32, minval=-stdv, maxval=stdv
    )

    x = jax.random.normal(k_x, (B, N, Fin), dtype=jnp.float32)
    adj = jax.random.uniform(k_adj, (B, N, N), dtype=jnp.float32)

    out = graph_convolution(x, weight, adj, bias)
    out = jax.block_until_ready(out)
    assert out.shape == (B, N, Fout)

    # Reference in the same regime as the kernel: bf16 operands, f32 accumulate.
    xb = x.astype(jnp.bfloat16)
    wb = weight.astype(jnp.bfloat16)
    ab = adj.astype(jnp.bfloat16)
    sup = jnp.einsum("bni,bif->bnf", xb, wb, preferred_element_type=jnp.float32)
    ref = jnp.einsum("bnm,bmf->bnf", ab, sup.astype(jnp.bfloat16),
                     preferred_element_type=jnp.float32)
    ref = ref + bias[:, None, :]
    assert jnp.allclose(out, ref, atol=2e-2, rtol=2e-2), float(
        jnp.max(jnp.abs(out - ref)))

    # Loose sanity check against the pure-f32 torch.bmm semantics as well.
    ref32 = jnp.einsum("bnm,bmf->bnf", adj,
                       jnp.einsum("bni,bif->bnf", x, weight)) + bias[:, None, :]
    assert jnp.allclose(out, ref32, atol=5e-2, rtol=5e-2), float(
        jnp.max(jnp.abs(out - ref32)))

    print("KERNEL_OK")
</pallas_src>

<mosaic_0001>
module attributes {stable_mosaic.version = 11 : i64} {
  func.func @_gcn_kernel(%arg0: i32, %arg1: i32, %arg2: i32, %arg3: memref<1x128x128xbf16, #tpu.memory_space<vmem>>, %arg4: memref<1x128x128xbf16, #tpu.memory_space<vmem>>, %arg5: memref<1x128x128xbf16, #tpu.memory_space<vmem>>, %arg6: memref<1x1x128xf32, #tpu.memory_space<vmem>>, %arg7: memref<1x128x128xf32, #tpu.memory_space<vmem>>, %arg8: memref<1x128x128xbf16, #tpu.memory_space<vmem>>, %arg9: memref<128x128xf32, #tpu.memory_space<vmem>>) attributes {dimension_semantics = [#tpu.dimension_semantics<parallel>, #tpu.dimension_semantics<arbitrary>, #tpu.dimension_semantics<arbitrary>], iteration_bounds = array<i64: 2, 1, 1>, scalar_prefetch = 0 : i64, scratch_operands = 2 : i64, tpu.core_type = #tpu.core_type<tc>, window_params = [{transform_indices = @transform_0, window_bounds = array<i64: 1, 128, 128>}, {transform_indices = @transform_1, window_bounds = array<i64: 1, 128, 128>}, {transform_indices = @transform_2, window_bounds = array<i64: 1, 128, 128>}, {transform_indices = @transform_3, window_bounds = array<i64: 1, 1, 128>}, {transform_indices = @transform_4, window_bounds = array<i64: 1, 128, 128>}]} {
    %c0_i32 = arith.constant 0 : i32
    %0 = arith.cmpi eq, %arg1, %c0_i32 : i32
    %1 = arith.extui %0 : i1 to i32
    %c0_i32_0 = arith.constant 0 : i32
    %2 = arith.cmpi ne, %1, %c0_i32_0 : i32
    scf.if %2 {
      %c0_13 = arith.constant 0 : index
      %c0_14 = arith.constant 0 : index
      %c0_15 = arith.constant 0 : index
      %18 = vector.load %arg3[%c0_13, %c0_14, %c0_15] : memref<1x128x128xbf16, #tpu.memory_space<vmem>>, vector<1x128x128xbf16>
      %19 = vector.shape_cast %18 : vector<1x128x128xbf16> to vector<128x128xbf16>
      %c0_16 = arith.constant 0 : index
      %c0_17 = arith.constant 0 : index
      %c0_18 = arith.constant 0 : index
      %20 = vector.load %arg4[%c0_16, %c0_17, %c0_18] : memref<1x128x128xbf16, #tpu.memory_space<vmem>>, vector<1x128x128xbf16>
      %21 = vector.shape_cast %20 : vector<1x128x128xbf16> to vector<128x128xbf16>
      %cst_19 = arith.constant dense<0.000000e+00> : vector<128x128xf32>
      %22 = tpu.matmul %19, %21, %cst_19 {dimension_numbers = #tpu.dot_dimension_numbers<[1], [0], [0], [1], [0, 0, 1, 1], [], []>} : vector<128x128xbf16>, vector<128x128xbf16>, vector<128x128xf32> -> vector<128x128xf32>
      %23 = arith.truncf %22 : vector<128x128xf32> to vector<128x128xbf16>
      %24 = arith.index_cast %arg2 : i32 to index
      %c0_20 = arith.constant 0 : index
      %c0_21 = arith.constant 0 : index
      %25 = vector.load %arg8[%24, %c0_20, %c0_21] : memref<1x128x128xbf16, #tpu.memory_space<vmem>>, vector<1x128x128xbf16>
      %26 = vector.shape_cast %25 : vector<1x128x128xbf16> to vector<128x128xbf16>
      %27 = vector.shape_cast %23 : vector<128x128xbf16> to vector<1x128x128xbf16>
      tpu.vector_store %arg8[%24, %c0_20, %c0_21], %27 {strides = array<i32>} : memref<1x128x128xbf16, #tpu.memory_space<vmem>>, vector<1x128x128xbf16>,
    } else {
    }
    %c0_i32_1 = arith.constant 0 : i32
    %3 = arith.cmpi eq, %arg2, %c0_i32_1 : i32
    %4 = arith.extui %3 : i1 to i32
    %c0_i32_2 = arith.constant 0 : i32
    %5 = arith.cmpi ne, %4, %c0_i32_2 : i32
    scf.if %5 {
      %cst_13 = arith.constant 0.000000e+00 : f32
      %18 = vector.broadcast %cst_13 : f32 to vector<128x128xf32>
      %c0_14 = arith.constant 0 : index
      %c0_15 = arith.constant 0 : index
      %19 = vector.load %arg9[%c0_14, %c0_15] : memref<128x128xf32, #tpu.memory_space<vmem>>, vector<128x128xf32>
      tpu.vector_store %arg9[%c0_14, %c0_15], %18 {strides = array<i32>} : memref<128x128xf32, #tpu.memory_space<vmem>>, vector<128x128xf32>,
    } else {
    }
    %c0 = arith.constant 0 : index
    %c0_3 = arith.constant 0 : index
    %6 = vector.load %arg9[%c0, %c0_3] : memref<128x128xf32, #tpu.memory_space<vmem>>, vector<128x128xf32>
    %c0_4 = arith.constant 0 : index
    %c0_5 = arith.constant 0 : index
    %c0_6 = arith.constant 0 : index
    %7 = vector.load %arg5[%c0_4, %c0_5, %c0_6] : memref<1x128x128xbf16, #tpu.memory_space<vmem>>, vector<1x128x128xbf16>
    %8 = vector.shape_cast %7 : vector<1x128x128xbf16> to vector<128x128xbf16>
    %9 = arith.index_cast %arg2 : i32 to index
    %c0_7 = arith.constant 0 : index
    %c0_8 = arith.constant 0 : index
    %10 = vector.load %arg8[%9, %c0_7, %c0_8] : memref<1x128x128xbf16, #tpu.memory_space<vmem>>, vector<1x128x128xbf16>
    %11 = vector.shape_cast %10 : vector<1x128x128xbf16> to vector<128x128xbf16>
    %cst = arith.constant dense<0.000000e+00> : vector<128x128xf32>
    %12 = tpu.matmul %8, %11, %cst {dimension_numbers = #tpu.dot_dimension_numbers<[1], [0], [0], [1], [0, 0, 1, 1], [], []>} : vector<128x128xbf16>, vector<128x128xbf16>, vector<128x128xf32> -> vector<128x128xf32>
    %13 = arith.addf %6, %12 : vector<128x128xf32>
    %c0_9 = arith.constant 0 : index
    %c0_10 = arith.constant 0 : index
    %14 = vector.load %arg9[%c0_9, %c0_10] : memref<128x128xf32, #tpu.memory_space<vmem>>, vector<128x128xf32>
    tpu.vector_store %arg9[%c0_9, %c0_10], %13 {strides = array<i32>} : memref<128x128xf32, #tpu.memory_space<vmem>>, vector<128x128xf32>,
    %c0_i32_11 = arith.constant 0 : i32
    %15 = arith.cmpi eq, %arg2, %c0_i32_11 : i32
    %16 = arith.extui %15 : i1 to i32
    %c0_i32_12 = arith.constant 0 : i32
    %17 = arith.cmpi ne, %16, %c0_i32_12 : i32
    scf.if %17 {
      %c0_13 = arith.constant 0 : index
      %c0_14 = arith.constant 0 : index
      %18 = vector.load %arg9[%c0_13, %c0_14] : memref<128x128xf32, #tpu.memory_space<vmem>>, vector<128x128xf32>
      %c0_15 = arith.constant 0 : index
      %c0_16 = arith.constant 0 : index
      %c0_17 = arith.constant 0 : index
      %19 = vector.load %arg6[%c0_15, %c0_16, %c0_17] : memref<1x1x128xf32, #tpu.memory_space<vmem>>, vector<1x1x128xf32>
      %20 = vector.shape_cast %19 : vector<1x1x128xf32> to vector<1x128xf32>
      %21 = vector.broadcast %20 : vector<1x128xf32> to vector<128x128xf32>
      %22 = arith.addf %18, %21 : vector<128x128xf32>
      %c0_18 = arith.constant 0 : index
      %c0_19 = arith.constant 0 : index
      %c0_20 = arith.constant 0 : index
      %23 = vector.load %arg7[%c0_18, %c0_19, %c0_20] : memref<1x128x128xf32, #tpu.memory_space<vmem>>, vector<1x128x128xf32>
      %24 = vector.shape_cast %23 : vector<1x128x128xf32> to vector<128x128xf32>
      %25 = vector.shape_cast %22 : vector<128x128xf32> to vector<1x128x128xf32>
      tpu.vector_store %arg7[%c0_18, %c0_19, %c0_20], %25 {strides = array<i32>} : memref<1x128x128xf32, #tpu.memory_space<vmem>>, vector<1x128x128xf32>,
    } else {
    }
    return
  }
  func.func @transform_0(%arg0: i32, %arg1: i32, %arg2: i32) -> (i32, i32, i32) {
    %c0_i32 = arith.constant 0 : i32
    %c0_i32_0 = arith.constant 0 : i32
    return %arg0, %arg2, %c0_i32 : i32, i32, i32
  }
  func.func @transform_1(%arg0: i32, %arg1: i32, %arg2: i32) -> (i32, i32, i32) {
    %c0_i32 = arith.constant 0 : i32
    %c0_i32_0 = arith.constant 0 : i32
    %c0_i32_1 = arith.constant 0 : i32
    return %arg0, %c0_i32, %c0_i32_0 : i32, i32, i32
  }
  func.func @transform_2(%arg0: i32, %arg1: i32, %arg2: i32) -> (i32, i32, i32) {
    %c0_i32 = arith.constant 0 : i32
    return %arg0, %arg1, %arg2 : i32, i32, i32
  }
  func.func @transform_3(%arg0: i32, %arg1: i32, %arg2: i32) -> (i32, i32, i32) {
    %c0_i32 = arith.constant 0 : i32
    %c0_i32_0 = arith.constant 0 : i32
    %c0_i32_1 = arith.constant 0 : i32
    return %arg0, %c0_i32, %c0_i32_0 : i32, i32, i32
  }
  func.func @transform_4(%arg0: i32, %arg1: i32, %arg2: i32) -> (i32, i32, i32) {
    %c0_i32 = arith.constant 0 : i32
    %c0_i32_0 = arith.constant 0 : i32
    return %arg0, %arg1, %c0_i32 : i32, i32, i32
  }
}

</mosaic_0001>

<llo_original>
// kernel: tpu_custom_call.1
$region0: #{tpu_custom_call.1}
  #allocation0 [shape = 'u32[]', space=smem, size = 0x4, offset = 0x4, fixed_abs, tag = 'smem constant byte address 0x4 - core index']
  #allocation1 [shape = 'u32[72,128]{1,0:T(1,128)}', space=vmem, size = 0x9000, scoped, tag = 'internal scratch']
  #allocation2 [shape = 'bf16[1,128,128]{2,1,0:T(8,128)(2,1)}', space=vmem, size = 0x8000, scoped, tag = 'scratch operand']
  #allocation3 [shape = 'f32[128,128]{1,0:T(8,128)}', space=vmem, size = 0x10000, scoped, tag = 'scratch operand']
  %s0 = inlined_call_operand.hbm [shape: bf16[2,128,128], index: 0, kind: input, shape index: {}]
  %s1 = inlined_call_operand.hbm [shape: bf16[2,128,128], index: 1, kind: input, shape index: {}]
  %s2 = inlined_call_operand.hbm [shape: bf16[2,128,128], index: 2, kind: input, shape index: {}]
  %s3 = inlined_call_operand.vmem [shape: f32[2,1,128], index: 3, kind: input, shape index: {}]
  %s4 = inlined_call_operand.hbm [shape: f32[2,128,128], index: 4, kind: output, shape index: {}]
  %s5 = sld [smem:[#allocation0]]
  $region73: #{tpu_custom_call.1} parent=0
    _
  %s7 = ssub.s32 1, %s5
  %s8 = scalar_select 0, %s7, %s5
  $region1: #{tpu_custom_call.1} parent=0
    #allocation4 [shape = 'u8[65536]{0}', space=vmem, size = 0x10000, scoped, tag = 'input window, operand 0']
    #allocation5 [shape = 's32[2]{0}', space=sflag, size = 0x8, scoped, tag = 'scoped memory for tpu_custom_call.1']
    #allocation6 [shape = 's32[2]{0}', space=sflag, size = 0x8, scoped, tag = 'scoped memory for tpu_custom_call.1']
    #allocation7 [shape = 'u8[65536]{0}', space=vmem, size = 0x10000, scoped, tag = 'input window, operand 1']
    #allocation8 [shape = 's32[2]{0}', space=sflag, size = 0x8, scoped, tag = 'scoped memory for tpu_custom_call.1']
    #allocation9 [shape = 'u8[65536]{0}', space=vmem, size = 0x10000, scoped, tag = 'input window, operand 2']
    #allocation10 [shape = 'u8[131072]{0}', space=vmem, size = 0x20000, scoped, tag = 'output window, operand 0']
    %9 = vsyncpa [#allocation5], 0
    %s10 = scalar_lea.sflag [#allocation5], 1
    %11 = vsyncpa %s10, 0
    %12 = vsyncpa [#allocation8], 0
    %s13 = scalar_lea.sflag [#allocation8], 1
    %14 = vsyncpa %s13, 0
    %15 = vsyncpa [#allocation6], 0
    %s16 = scalar_lea.sflag [#allocation6], 1
    %17 = vsyncpa %s16, 0
    loop: start=0, step=1, limit=4
    $region2: #{tpu_custom_call.1} parent=1 // loop_pre_header
      _
    $region3: #{tpu_custom_call.1} parent=1 // loop_header
      %s19 = sphi 0, %s23
      %p20 = scmp.ge.s32.totalorder %s19, 4
      %s26 = sphi 0, %s45
      %s27 = sphi 0, %s41
      %s28 = sphi 0, %s37
      %s29 = sphi 0, %s26
      %s30 = sphi 0, %s27
      %s31 = sphi 0, %s28
      %s32 = sphi 0, %s29
      %s33 = sphi 0, %s30
      %s34 = sphi 0, %s31
      %s50 = sphi 0, %s52
      %s53 = sphi 0, %s50
      %s54 = sphi 0, %s53
      %s70 = sphi 0, %s54
      %s76 = sphi 0, %s78
      %s79 = sphi 0, %s76
      %s80 = sphi 0, %s79
      %s96 = sphi 0, %s80
      %s106 = sphi 0, %s108
      %s109 = sphi 0, %s106
      %s110 = sphi 0, %s109
      %s126 = sphi 0, %s110
      %s132 = sphi 0, %s134
      %s135 = sphi 0, %s132
      %s136 = sphi 0, %s135
      %s152 = sphi 0, %s136
      %s160 = sphi 0, %s162
      %s163 = sphi 0, %s160
      %s164 = sphi 0, %s163
      %s180 = sphi 0, %s164
    $region4: #{tpu_custom_call.1} parent=1 // loop_header_branch
      %22 = sbr.rel (%p20) target = $region8
    $region5: #{tpu_custom_call.1} parent=1 // loop_body
      %s24 = ssub.s32 %s19, 1
      %s25 = ssub.s32 %s19, 2
      %s35 = sadd.s32 1, %s28
      %p36 = scmp.ge.s32.totalorder %s35, 1
      %s37 = scalar_select %p36, 0, %s35
      %s38 = sadd.s32 1, %s27
      %s39 = scalar_select %p36, %s38, %s27
      %p40 = scmp.ge.s32.totalorder %s39, 1
      %s41 = scalar_select %p40, 0, %s39
      %s42 = sadd.s32 1, %s26
      %s43 = scalar_select %p40, %s42, %s26
      %p44 = scmp.ge.s32.totalorder %s43, 2
      %s45 = scalar_select %p44, 0, %s43
      %s46 = ssub.s32 %s26, %s45
      %s47 = ssub.s32 %s28, %s37
      %s48 = sor.u32 %s46, %s47
      %p49 = scmp.eq.s32.totalorder %s48, 0
      %s51 = sadd.s32 %s50, 1
      %s52 = scalar_select %p49, %s50, %s51
      %p55 = pneg %p49
      %p56 = scmp.eq.s32.totalorder %s19, 1
      %p57 = por %p55, %p56
      %p58 = scmp.ne.s32.totalorder %s50, %s53
      %p59 = scmp.eq.s32.totalorder %s19, 0
      %p60 = por %p58, %p59
      %p61 = scmp.ne.s32.totalorder %s50, %s53
      %p62 = scmp.eq.s32.totalorder %s24, 1
      %p63 = por %p61, %p62
      %p64 = scmp.ne.s32.totalorder %s53, %s54
      %p65 = scmp.eq.s32.totalorder %s24, 0
      %p66 = por %p64, %p65
      %p67 = scmp.ne.s32.totalorder %s53, %s54
      %p68 = scmp.eq.s32.totalorder %s25, 1
      %p69 = por %p67, %p68
      %p71 = scmp.ne.s32.totalorder %s54, %s70
      %p72 = scmp.eq.s32.totalorder %s25, 0
      %p73 = por %p71, %p72
      %s74 = ssub.s32 %s26, %s45
      %p75 = scmp.eq.s32.totalorder %s74, 0
      %s77 = sadd.s32 %s76, 1
      %s78 = scalar_select %p75, %s76, %s77
      %p81 = pneg %p75
      %p82 = scmp.eq.s32.totalorder %s19, 1
      %p83 = por %p81, %p82
      %p84 = scmp.ne.s32.totalorder %s76, %s79
      %p85 = scmp.eq.s32.totalorder %s19, 0
      %p86 = por %p84, %p85
      %p87 = scmp.ne.s32.totalorder %s76, %s79
      %p88 = scmp.eq.s32.totalorder %s24, 1
      %p89 = por %p87, %p88
      %p90 = scmp.ne.s32.totalorder %s79, %s80
      %p91 = scmp.eq.s32.totalorder %s24, 0
      %p92 = por %p90, %p91
      %p93 = scmp.ne.s32.totalorder %s79, %s80
      %p94 = scmp.eq.s32.totalorder %s25, 1
      %p95 = por %p93, %p94
      %p97 = scmp.ne.s32.totalorder %s80, %s96
      %p98 = scmp.eq.s32.totalorder %s25, 0
      %p99 = por %p97, %p98
      %s100 = ssub.s32 %s26, %s45
      %s101 = ssub.s32 %s27, %s41
      %s102 = sor.u32 %s100, %s101
      %s103 = ssub.s32 %s28, %s37
      %s104 = sor.u32 %s102, %s103
      %p105 = scmp.eq.s32.totalorder %s104, 0
      %s107 = sadd.s32 %s106, 1
      %s108 = scalar_select %p105, %s106, %s107
      %p111 = pneg %p105
      %p112 = scmp.eq.s32.totalorder %s19, 1
      %p113 = por %p111, %p112
      %p114 = scmp.ne.s32.totalorder %s106, %s109
      %p115 = scmp.eq.s32.totalorder %s19, 0
      %p116 = por %p114, %p115
      %p117 = scmp.ne.s32.totalorder %s106, %s109
      %p118 = scmp.eq.s32.totalorder %s24, 1
      %p119 = por %p117, %p118
      %p120 = scmp.ne.s32.totalorder %s109, %s110
      %p121 = scmp.eq.s32.totalorder %s24, 0
      %p122 = por %p120, %p121
      %p123 = scmp.ne.s32.totalorder %s109, %s110
      %p124 = scmp.eq.s32.totalorder %s25, 1
      %p125 = por %p123, %p124
      %p127 = scmp.ne.s32.totalorder %s110, %s126
      %p128 = scmp.eq.s32.totalorder %s25, 0
      %p129 = por %p127, %p128
      %s130 = ssub.s32 %s26, %s45
      %p131 = scmp.eq.s32.totalorder %s130, 0
      %s133 = sadd.s32 %s132, 1
      %s134 = scalar_select %p131, %s132, %s133
      %p137 = pneg %p131
      %p138 = scmp.eq.s32.totalorder %s19, 1
      %p139 = por %p137, %p138
      %p140 = scmp.ne.s32.totalorder %s132, %s135
      %p141 = scmp.eq.s32.totalorder %s19, 0
      %p142 = por %p140, %p141
      %p143 = scmp.ne.s32.totalorder %s132, %s135
      %p144 = scmp.eq.s32.totalorder %s24, 1
      %p145 = por %p143, %p144
      %p146 = scmp.ne.s32.totalorder %s135, %s136
      %p147 = scmp.eq.s32.totalorder %s24, 0
      %p148 = por %p146, %p147
      %p149 = scmp.ne.s32.totalorder %s135, %s136
      %p150 = scmp.eq.s32.totalorder %s25, 1
      %p151 = por %p149, %p150
      %p153 = scmp.ne.s32.totalorder %s136, %s152
      %p154 = scmp.eq.s32.totalorder %s25, 0
      %p155 = por %p153, %p154
      %s156 = ssub.s32 %s26, %s45
      %s157 = ssub.s32 %s27, %s41
      %s158 = sor.u32 %s156, %s157
      %p159 = scmp.eq.s32.totalorder %s158, 0
      %s161 = sadd.s32 %s160, 1
      %s162 = scalar_select %p159, %s160, %s161
      %p165 = pneg %p159
      %p166 = scmp.eq.s32.totalorder %s19, 1
      %p167 = por %p165, %p166
      %p168 = scmp.ne.s32.totalorder %s160, %s163
      %p169 = scmp.eq.s32.totalorder %s19, 0
      %p170 = por %p168, %p169
      %p171 = scmp.ne.s32.totalorder %s160, %s163
      %p172 = scmp.eq.s32.totalorder %s24, 1
      %p173 = por %p171, %p172
      %p174 = scmp.ne.s32.totalorder %s163, %s164
      %p175 = scmp.eq.s32.totalorder %s24, 0
      %p176 = por %p174, %p175
      %p177 = scmp.ne.s32.totalorder %s163, %s164
      %p178 = scmp.eq.s32.totalorder %s25, 1
      %p179 = por %p177, %p178
      %p181 = scmp.ne.s32.totalorder %s164, %s180
      %p182 = scmp.eq.s32.totalorder %s25, 0
      %p183 = por %p181, %p182
      %p184 = scmp.le.s32.totalorder 1, %s19
      %p185 = scmp.lt.s32.totalorder %s19, 3
      %p186 = pnand %p184, %p185
      %p187 = pneg %p186
      // Predicated region
      $region9: #{tpu_custom_call.1} parent=5 // pred_check
        _
      $region10: #{tpu_custom_call.1} parent=5 // pred_check_branch
        %189 = sbr.rel (%p186) target = $region12
      $region11: #{tpu_custom_call.1} parent=5 // pred_region
        %s190 = ssub.s32 %s19, 1
      $region12: #{tpu_custom_call.1} parent=5 // pred_fallthru
        _
      %p191 = scmp.lt.s32.totalorder %s19, 2
      // Predicated region
      $region13: #{tpu_custom_call.1} parent=5 // pred_check
        %p192 = pneg %p191
      $region14: #{tpu_custom_call.1} parent=5 // pred_check_branch
        %194 = sbr.rel (%p192) target = $region16
      $region15: #{tpu_custom_call.1} parent=5 // pred_region
        // Predicated region
        $region17: #{tpu_custom_call.1} parent=15 // pred_check
          %p195 = pneg %p60
        $region18: #{tpu_custom_call.1} parent=15 // pred_check_branch
          %197 = sbr.rel (%p195) target = $region20
        $region19: #{tpu_custom_call.1} parent=15 // pred_region
          %s198 = sand.u32 %s50, 1
          %s199 = scalar_lea.sflag [#allocation5], %s198
          %s200 = sand.u32 %s50, 1
          %s201 = smul.addr %s200, 64
          %s202 = scalar_lea.vmem [#allocation4], %s201
          %s203 = smul.u32 16, %s28
          %205 = vsyncadd %s199, 0
          %s206 = smul.addr %s26, 16
          %s207 = sadd.s32 %s203, %s206
          %s208 = smul.addr %s207, 4
          %s209 = scalar_lea.hbm %s0, %s208
          %s210 = sshll.u32 %s209, 4
          %s211 = int_to_ptr.hbm [resolvable:$true] %s210
          %s212 = sshll.u32 %s202, 4
          %s213 = int_to_ptr.vmem [resolvable:$true] %s212
          %218 = dma.hbm_to_vmem [thread:$0]  %s211, 1024, %s213, %s199, 64, 64, 4
        $region20: #{tpu_custom_call.1} parent=15 // pred_fallthru
          _
        // Predicated region
        $region21: #{tpu_custom_call.1} parent=15 // pred_check
          %p219 = pneg %p86
        $region22: #{tpu_custom_call.1} parent=15 // pred_check_branch
          %221 = sbr.rel (%p219) target = $region24
        $region23: #{tpu_custom_call.1} parent=15 // pred_region
          %s222 = sand.u32 %s19, 1
          %s223 = scalar_lea.sflag [#allocation8], %s222
          %s224 = sand.u32 %s76, 1
          %s225 = smul.addr %s224, 64
          %s226 = scalar_lea.vmem [#allocation7], %s225
          %228 = vsyncadd %s223, 0
          %s229 = smul.addr %s26, 16
          %s230 = smul.addr %s229, 4
          %s231 = scalar_lea.hbm %s1, %s230
          %s232 = sshll.u32 %s231, 4
          %s233 = int_to_ptr.hbm [resolvable:$true] %s232
          %s234 = sshll.u32 %s226, 4
          %s235 = int_to_ptr.vmem [resolvable:$true] %s234
          %240 = dma.hbm_to_vmem [thread:$0]  %s233, 1024, %s235, %s223, 64, 64, 4
        $region24: #{tpu_custom_call.1} parent=15 // pred_fallthru
          _
        // Predicated region
        $region25: #{tpu_custom_call.1} parent=15 // pred_check
          %p241 = pneg %p116
        $region26: #{tpu_custom_call.1} parent=15 // pred_check_branch
          %243 = sbr.rel (%p241) target = $region28
        $region27: #{tpu_custom_call.1} parent=15 // pred_region
          %s244 = sand.u32 %s19, 1
          %s245 = scalar_lea.sflag [#allocation8], %s244
          %s246 = sand.u32 %s106, 1
          %s247 = smul.addr %s246, 64
          %s248 = scalar_lea.vmem [#allocation9], %s247
          %s249 = smul.u32 16, %s27
          %251 = vsyncadd %s245, 0
          %s252 = sadd.s32 %s28, %s249
          %s253 = smul.addr %s26, 16
          %s254 = sadd.s32 %s252, %s253
          %s255 = smul.addr %s254, 4
          %s256 = scalar_lea.hbm %s2, %s255
          %s257 = sshll.u32 %s256, 4
          %s258 = int_to_ptr.hbm [resolvable:$true] %s257
          %s259 = sshll.u32 %s248, 4
          %s260 = int_to_ptr.vmem [resolvable:$true] %s259
          %265 = dma.hbm_to_vmem [thread:$0]  %s258, 1024, %s260, %s245, 64, 64, 4
        $region28: #{tpu_custom_call.1} parent=15 // pred_fallthru
          _
        // Predicated region
        $region29: #{tpu_custom_call.1} parent=15 // pred_check
          %p266 = pneg %p142
        $region30: #{tpu_custom_call.1} parent=15 // pred_check_branch
          %268 = sbr.rel (%p266) target = $region32
        $region31: #{tpu_custom_call.1} parent=15 // pred_region
          %p269 = scmp.lt.s32.totalorder %s26, 1
          %s270 = scalar_select %p269, %s26, 1
          %s271 = scalar_lea.vmem %s3, %s270
        $region32: #{tpu_custom_call.1} parent=15 // pred_fallthru
          _
      $region16: #{tpu_custom_call.1} parent=5 // pred_fallthru
        _
      %p272 = scmp.le.s32.totalorder 1, %s19
      %p273 = scmp.lt.s32.totalorder %s19, 3
      %p274 = pnand %p272, %p273
      %p275 = pneg %p274
      // Predicated region
      $region33: #{tpu_custom_call.1} parent=5 // pred_check
        _
      $region34: #{tpu_custom_call.1} parent=5 // pred_check_branch
        %277 = sbr.rel (%p274) target = $region36
      $region35: #{tpu_custom_call.1} parent=5 // pred_region
        %s278 = ssub.s32 %s19, 1
        %s279 = sand.u32 %s53, 1
        %s280 = scalar_lea.sflag [#allocation5], %s279
        %s281 = sand.u32 %s53, 1
        %s282 = smul.addr %s281, 64
        %s283 = scalar_lea.vmem [#allocation4], %s282
        // Predicated region
        $region37: #{tpu_custom_call.1} parent=35 // pred_check
          %p284 = pneg %p66
        $region38: #{tpu_custom_call.1} parent=35 // pred_check_branch
          %286 = sbr.rel (%p284) target = $region40
        $region39: #{tpu_custom_call.1} parent=35 // pred_region
          %288 = dma.done %s280, 1024
        $region40: #{tpu_custom_call.1} parent=35 // pred_fallthru
          _
        %s289 = sand.u32 %s24, 1
        %s290 = scalar_lea.sflag [#allocation8], %s289
        %s291 = sand.u32 %s79, 1
        %s292 = smul.addr %s291, 64
        %s293 = scalar_lea.vmem [#allocation7], %s292
        // Predicated region
        $region41: #{tpu_custom_call.1} parent=35 // pred_check
          %p294 = pneg %p92
        $region42: #{tpu_custom_call.1} parent=35 // pred_check_branch
          %296 = sbr.rel (%p294) target = $region44
        $region43: #{tpu_custom_call.1} parent=35 // pred_region
          %298 = dma.done %s290, 1024
        $region44: #{tpu_custom_call.1} parent=35 // pred_fallthru
          _
        %s299 = sand.u32 %s24, 1
        %s300 = scalar_lea.sflag [#allocation8], %s299
        %s301 = sand.u32 %s109, 1
        %s302 = smul.addr %s301, 64
        %s303 = scalar_lea.vmem [#allocation9], %s302
        // Predicated region
        $region45: #{tpu_custom_call.1} parent=35 // pred_check
          %p304 = pneg %p122
        $region46: #{tpu_custom_call.1} parent=35 // pred_check_branch
          %306 = sbr.rel (%p304) target = $region48
        $region47: #{tpu_custom_call.1} parent=35 // pred_region
          %308 = dma.done %s300, 1024
        $region48: #{tpu_custom_call.1} parent=35 // pred_fallthru
          _
        %s309 = sand.u32 %s53, 1
        %s310 = scalar_lea.sflag [#allocation5], %s309
        %s311 = sand.u32 %s53, 1
        %s312 = smul.addr %s311, 64
        %s313 = scalar_lea.vmem [#allocation4], %s312
        %p314 = pneg %p66
        %p315 = pneg %p63
        %s316 = sand.u32 %s24, 1
        %s317 = scalar_lea.sflag [#allocation8], %s316
        %s318 = sand.u32 %s79, 1
        %s319 = smul.addr %s318, 64
        %s320 = scalar_lea.vmem [#allocation7], %s319
        %p321 = pneg %p92
        %p322 = pneg %p89
        %s323 = sand.u32 %s24, 1
        %s324 = scalar_lea.sflag [#allocation8], %s323
        %s325 = sand.u32 %s109, 1
        %s326 = smul.addr %s325, 64
        %s327 = scalar_lea.vmem [#allocation9], %s326
        %p328 = pneg %p122
        %p329 = pneg %p119
        %p330 = scmp.lt.s32.totalorder %s29, 1
        %s331 = scalar_select %p330, %s29, 1
        %s332 = scalar_lea.vmem %s3, %s331
        %p333 = pneg %p148
        %p334 = pneg %p145
        %p335 = pneg %p176
        %p336 = pneg %p173
        %s337 = sand.u32 %s163, 1
        %s338 = scalar_lea.sflag [#allocation6], %s337
        %s339 = sand.u32 %s163, 1
        %s340 = smul.addr %s339, 128
        %s341 = scalar_lea.vmem [#allocation10], %s340
        %s342 = smul.u32 16, %s31
        %s343 = smul.u32 16, %s30
        %p344 = scmp.lt.s32.totalorder %s29, 1
        %s345 = scalar_select %p344, %s29, 1
        %s346 = scalar_lea.vmem %s3, %s345
        %s347 = smul.u32 16, %s30
        %p348 = scmp.eq.s32.totalorder %s30, 0
        // Predicated region
        $region49: #{tpu_custom_call.1} parent=35 // pred_check
          %p349 = pneg %p348
        $region50: #{tpu_custom_call.1} parent=35 // pred_check_branch
          %351 = sbr.rel (%p349) target = $region52
        $region51: #{tpu_custom_call.1} parent=35 // pred_region
          %v352 = vld [vmem:[%s283] sm:$0xf]
          %v353 = vld [vmem:[%s283 + $0x4] sm:$0xf]
          %v354 = vld [vmem:[%s283 + $0x8] sm:$0xf]
          %v355 = vld [vmem:[%s283 + $0xc] sm:$0xf]
          %v356 = vld [vmem:[%s283 + $0x10] sm:$0xf]
          %v357 = vld [vmem:[%s283 + $0x14] sm:$0xf]
          %v358 = vld [vmem:[%s283 + $0x18] sm:$0xf]
          %v359 = vld [vmem:[%s283 + $0x1c] sm:$0xf]
          %v360 = vld [vmem:[%s283 + $0x20] sm:$0xf]
          %v361 = vld [vmem:[%s283 + $0x24] sm:$0xf]
          %v362 = vld [vmem:[%s283 + $0x28] sm:$0xf]
          %v363 = vld [vmem:[%s283 + $0x2c] sm:$0xf]
          %v364 = vld [vmem:[%s283 + $0x30] sm:$0xf]
          %v365 = vld [vmem:[%s283 + $0x34] sm:$0xf]
          %v366 = vld [vmem:[%s283 + $0x38] sm:$0xf]
          %v367 = vld [vmem:[%s283 + $0x3c] sm:$0xf]
          %v368 = vld [vmem:[%s293] sm:$0xf]
          %v369 = vld [vmem:[%s293 + $0x4] sm:$0xf]
          %v370 = vld [vmem:[%s293 + $0x8] sm:$0xf]
          %v371 = vld [vmem:[%s293 + $0xc] sm:$0xf]
          %v372 = vld [vmem:[%s293 + $0x10] sm:$0xf]
          %v373 = vld [vmem:[%s293 + $0x14] sm:$0xf]
          %v374 = vld [vmem:[%s293 + $0x18] sm:$0xf]
          %v375 = vld [vmem:[%s293 + $0x1c] sm:$0xf]
          %v376 = vld [vmem:[%s293 + $0x20] sm:$0xf]
          %v377 = vld [vmem:[%s293 + $0x24] sm:$0xf]
          %v378 = vld [vmem:[%s293 + $0x28] sm:$0xf]
          %v379 = vld [vmem:[%s293 + $0x2c] sm:$0xf]
          %v380 = vld [vmem:[%s293 + $0x30] sm:$0xf]
          %v381 = vld [vmem:[%s293 + $0x34] sm:$0xf]
          %v382 = vld [vmem:[%s293 + $0x38] sm:$0xf]
          %v383 = vld [vmem:[%s293 + $0x3c] sm:$0xf]
          %v400 = vunpack.c.l.b16 %v352
          %v401 = vunpack.c.l.b16 %v353
          %v402 = vunpack.c.l.b16 %v354
          %v403 = vunpack.c.l.b16 %v355
          %v404 = vunpack.c.l.b16 %v356
          %v405 = vunpack.c.l.b16 %v357
          %v406 = vunpack.c.l.b16 %v358
          %v407 = vunpack.c.l.b16 %v359
          %v408 = vunpack.c.l.b16 %v360
          %v409 = vunpack.c.l.b16 %v361
          %v410 = vunpack.c.l.b16 %v362
          %v411 = vunpack.c.l.b16 %v363
          %v412 = vunpack.c.l.b16 %v364
          %v413 = vunpack.c.l.b16 %v365
          %v414 = vunpack.c.l.b16 %v366
          %v415 = vunpack.c.l.b16 %v367
          %v416 = vpack.c.b16 %v401, %v400
          %v417 = vpack.c.b16 %v403, %v402
          %v418 = vpack.c.b16 %v405, %v404
          %v419 = vpack.c.b16 %v407, %v406
          %v420 = vpack.c.b16 %v409, %v408
          %v421 = vpack.c.b16 %v411, %v410
          %v422 = vpack.c.b16 %v413, %v412
          %v423 = vpack.c.b16 %v415, %v414
          %v448 = vunpack.c.l.b16 %v368
          %v449 = vunpack.c.l.b16 %v369
          %v450 = vunpack.c.l.b16 %v370
          %v451 = vunpack.c.l.b16 %v371
          %v452 = vunpack.c.l.b16 %v372
          %v453 = vunpack.c.l.b16 %v373
          %v454 = vunpack.c.l.b16 %v374
          %v455 = vunpack.c.l.b16 %v375
          %v456 = vunpack.c.l.b16 %v376
          %v457 = vunpack.c.l.b16 %v377
          %v458 = vunpack.c.l.b16 %v378
          %v459 = vunpack.c.l.b16 %v379
          %v460 = vunpack.c.l.b16 %v380
          %v461 = vunpack.c.l.b16 %v381
          %v462 = vunpack.c.l.b16 %v382
          %v463 = vunpack.c.l.b16 %v383
          %v464 = vpack.c.b16 %v449, %v448
          %v465 = vpack.c.b16 %v451, %v450
          %v466 = vpack.c.b16 %v453, %v452
          %v467 = vpack.c.b16 %v455, %v454
          %v468 = vpack.c.b16 %v457, %v456
          %v469 = vpack.c.b16 %v459, %v458
          %v470 = vpack.c.b16 %v461, %v460
          %v471 = vpack.c.b16 %v463, %v462
          %480 = vmatpush.bf16.msra.mxu0 %v471
          %481 = vmatpush.bf16.msra.mxu0 %v470
          %482 = vmatpush.bf16.msra.mxu0 %v469
          %483 = vmatpush.bf16.msra.mxu0 %v468
          %484 = vmatpush.bf16.msra.mxu0 %v467
          %485 = vmatpush.bf16.msra.mxu0 %v466
          %486 = vmatpush.bf16.msra.mxu0 %v465
          %487 = vmatpush.bf16.msra.mxu0 %v464
          %488 = vmatmul.bf16.gmra.mxu0 %v416
          %v489 = vpop.f32.mrf.mxu0
          %v490 = vadd.f32 0.0, %v489
          %v491 = vpop.f32.mrf.mxu0
          %v492 = vadd.f32 0.0, %v491
          %493 = vmatmul.bf16.gmra.mxu0 %v417
          %v494 = vpop.f32.mrf.mxu0
          %v495 = vadd.f32 0.0, %v494
          %v496 = vpop.f32.mrf.mxu0
          %v497 = vadd.f32 0.0, %v496
          %498 = vmatmul.bf16.gmra.mxu0 %v418
          %v499 = vpop.f32.mrf.mxu0
          %v500 = vadd.f32 0.0, %v499
          %v501 = vpop.f32.mrf.mxu0
          %v502 = vadd.f32 0.0, %v501
          %503 = vmatmul.bf16.gmra.mxu0 %v419
          %v504 = vpop.f32.mrf.mxu0
          %v505 = vadd.f32 0.0, %v504
          %v506 = vpop.f32.mrf.mxu0
          %v507 = vadd.f32 0.0, %v506
          %508 = vmatmul.bf16.gmra.mxu0 %v420
          %v509 = vpop.f32.mrf.mxu0
          %v510 = vadd.f32 0.0, %v509
          %v511 = vpop.f32.mrf.mxu0
          %v512 = vadd.f32 0.0, %v511
          %513 = vmatmul.bf16.gmra.mxu0 %v421
          %v514 = vpop.f32.mrf.mxu0
          %v515 = vadd.f32 0.0, %v514
          %v516 = vpop.f32.mrf.mxu0
          %v517 = vadd.f32 0.0, %v516
          %518 = vmatmul.bf16.gmra.mxu0 %v422
          %v519 = vpop.f32.mrf.mxu0
          %v520 = vadd.f32 0.0, %v519
          %v521 = vpop.f32.mrf.mxu0
          %v522 = vadd.f32 0.0, %v521
          %523 = vmatmul.bf16.gmra.mxu0 %v423
          %v524 = vpop.f32.mrf.mxu0
          %v525 = vadd.f32 0.0, %v524
          %v526 = vpop.f32.mrf.mxu0
          %v527 = vadd.f32 0.0, %v526
          %528 = vdwg.mxu0
          %v529 = vpack.c.bf16 %v490, %v490
          %v530 = vpack.c.bf16 %v492, %v492
          %v531 = vpack.c.bf16 %v495, %v495
          %v532 = vpack.c.bf16 %v497, %v497
          %v533 = vpack.c.bf16 %v500, %v500
          %v534 = vpack.c.bf16 %v502, %v502
          %v535 = vpack.c.bf16 %v505, %v505
          %v536 = vpack.c.bf16 %v507, %v507
          %v537 = vpack.c.bf16 %v510, %v510
          %v538 = vpack.c.bf16 %v512, %v512
          %v539 = vpack.c.bf16 %v515, %v515
          %v540 = vpack.c.bf16 %v517, %v517
          %v541 = vpack.c.bf16 %v520, %v520
          %v542 = vpack.c.bf16 %v522, %v522
          %v543 = vpack.c.bf16 %v525, %v525
          %v544 = vpack.c.bf16 %v527, %v527
          %s545 = smul.u32 %s31, 16
          %s546 = smul.addr %s545, 4
          %s547 = scalar_lea.vmem [#allocation2], %s546
          %548 = vst [vmem:[%s547] sm:$0xf] %v529
          %549 = vst [vmem:[%s547 + $0x4] sm:$0xf] %v530
          %550 = vst [vmem:[%s547 + $0x8] sm:$0xf] %v531
          %551 = vst [vmem:[%s547 + $0xc] sm:$0xf] %v532
          %552 = vst [vmem:[%s547 + $0x10] sm:$0xf] %v533
          %553 = vst [vmem:[%s547 + $0x14] sm:$0xf] %v534
          %554 = vst [vmem:[%s547 + $0x18] sm:$0xf] %v535
          %555 = vst [vmem:[%s547 + $0x1c] sm:$0xf] %v536
          %556 = vst [vmem:[%s547 + $0x20] sm:$0xf] %v537
          %557 = vst [vmem:[%s547 + $0x24] sm:$0xf] %v538
          %558 = vst [vmem:[%s547 + $0x28] sm:$0xf] %v539
          %559 = vst [vmem:[%s547 + $0x2c] sm:$0xf] %v540
          %560 = vst [vmem:[%s547 + $0x30] sm:$0xf] %v541
          %561 = vst [vmem:[%s547 + $0x34] sm:$0xf] %v542
          %562 = vst [vmem:[%s547 + $0x38] sm:$0xf] %v543
          %563 = vst [vmem:[%s547 + $0x3c] sm:$0xf] %v544
        $region52: #{tpu_custom_call.1} parent=35 // pred_fallthru
          _
        %p564 = scmp.eq.s32.totalorder %s31, 0
        // Predicated region
        $region53: #{tpu_custom_call.1} parent=35 // pred_check
          %p565 = pneg %p564
        $region54: #{tpu_custom_call.1} parent=35 // pred_check_branch
          %567 = sbr.rel (%p565) target = $region56
        $region55: #{tpu_custom_call.1} parent=35 // pred_region
          %568 = vst [vmem:[#allocation3] sm:$0xff] 0.0
          %569 = vst [vmem:[#allocation3 + $0x8] sm:$0xff] 0.0
          %570 = vst [vmem:[#allocation3 + $0x10] sm:$0xff] 0.0
          %571 = vst [vmem:[#allocation3 + $0x18] sm:$0xff] 0.0
          %572 = vst [vmem:[#allocation3 + $0x20] sm:$0xff] 0.0
          %573 = vst [vmem:[#allocation3 + $0x28] sm:$0xff] 0.0
          %574 = vst [vmem:[#allocation3 + $0x30] sm:$0xff] 0.0
          %575 = vst [vmem:[#allocation3 + $0x38] sm:$0xff] 0.0
          %576 = vst [vmem:[#allocation3 + $0x40] sm:$0xff] 0.0
          %577 = vst [vmem:[#allocation3 + $0x48] sm:$0xff] 0.0
          %578 = vst [vmem:[#allocation3 + $0x50] sm:$0xff] 0.0
          %579 = vst [vmem:[#allocation3 + $0x58] sm:$0xff] 0.0
          %580 = vst [vmem:[#allocation3 + $0x60] sm:$0xff] 0.0
          %581 = vst [vmem:[#allocation3 + $0x68] sm:$0xff] 0.0
          %582 = vst [vmem:[#allocation3 + $0x70] sm:$0xff] 0.0
          %583 = vst [vmem:[#allocation3 + $0x78] sm:$0xff] 0.0
        $region56: #{tpu_custom_call.1} parent=35 // pred_fallthru
          _
        %v584 = vld [vmem:[#allocation3] sm:$0xff]
        %v585 = vld [vmem:[#allocation3 + $0x8] sm:$0xff]
        %v586 = vld [vmem:[#allocation3 + $0x10] sm:$0xff]
        %v587 = vld [vmem:[#allocation3 + $0x18] sm:$0xff]
        %v588 = vld [vmem:[#allocation3 + $0x20] sm:$0xff]
        %v589 = vld [vmem:[#allocation3 + $0x28] sm:$0xff]
        %v590 = vld [vmem:[#allocation3 + $0x30] sm:$0xff]
        %v591 = vld [vmem:[#allocation3 + $0x38] sm:$0xff]
        %v592 = vld [vmem:[#allocation3 + $0x40] sm:$0xff]
        %v593 = vld [vmem:[#allocation3 + $0x48] sm:$0xff]
        %v594 = vld [vmem:[#allocation3 + $0x50] sm:$0xff]
        %v595 = vld [vmem:[#allocation3 + $0x58] sm:$0xff]
        %v596 = vld [vmem:[#allocation3 + $0x60] sm:$0xff]
        %v597 = vld [vmem:[#allocation3 + $0x68] sm:$0xff]
        %v598 = vld [vmem:[#allocation3 + $0x70] sm:$0xff]
        %v599 = vld [vmem:[#allocation3 + $0x78] sm:$0xff]
        %v600 = vld [vmem:[%s303] sm:$0xf]
        %v601 = vld [vmem:[%s303 + $0x4] sm:$0xf]
        %v602 = vld [vmem:[%s303 + $0x8] sm:$0xf]
        %v603 = vld [vmem:[%s303 + $0xc] sm:$0xf]
        %v604 = vld [vmem:[%s303 + $0x10] sm:$0xf]
        %v605 = vld [vmem:[%s303 + $0x14] sm:$0xf]
        %v606 = vld [vmem:[%s303 + $0x18] sm:$0xf]
        %v607 = vld [vmem:[%s303 + $0x1c] sm:$0xf]
        %v608 = vld [vmem:[%s303 + $0x20] sm:$0xf]
        %v609 = vld [vmem:[%s303 + $0x24] sm:$0xf]
        %v610 = vld [vmem:[%s303 + $0x28] sm:$0xf]
        %v611 = vld [vmem:[%s303 + $0x2c] sm:$0xf]
        %v612 = vld [vmem:[%s303 + $0x30] sm:$0xf]
        %v613 = vld [vmem:[%s303 + $0x34] sm:$0xf]
        %v614 = vld [vmem:[%s303 + $0x38] sm:$0xf]
        %v615 = vld [vmem:[%s303 + $0x3c] sm:$0xf]
        %s616 = smul.u32 %s31, 16
        %s617 = smul.addr %s616, 4
        %s618 = scalar_lea.vmem [#allocation2], %s617
        %v619 = vld [vmem:[%s618] sm:$0xf]
        %v620 = vld [vmem:[%s618 + $0x4] sm:$0xf]
        %v621 = vld [vmem:[%s618 + $0x8] sm:$0xf]
        %v622 = vld [vmem:[%s618 + $0xc] sm:$0xf]
        %v623 = vld [vmem:[%s618 + $0x10] sm:$0xf]
        %v624 = vld [vmem:[%s618 + $0x14] sm:$0xf]
        %v625 = vld [vmem:[%s618 + $0x18] sm:$0xf]
        %v626 = vld [vmem:[%s618 + $0x1c] sm:$0xf]
        %v627 = vld [vmem:[%s618 + $0x20] sm:$0xf]
        %v628 = vld [vmem:[%s618 + $0x24] sm:$0xf]
        %v629 = vld [vmem:[%s618 + $0x28] sm:$0xf]
        %v630 = vld [vmem:[%s618 + $0x2c] sm:$0xf]
        %v631 = vld [vmem:[%s618 + $0x30] sm:$0xf]
        %v632 = vld [vmem:[%s618 + $0x34] sm:$0xf]
        %v633 = vld [vmem:[%s618 + $0x38] sm:$0xf]
        %v634 = vld [vmem:[%s618 + $0x3c] sm:$0xf]
        %v651 = vunpack.c.l.b16 %v600
        %v652 = vunpack.c.l.b16 %v601
        %v653 = vunpack.c.l.b16 %v602
        %v654 = vunpack.c.l.b16 %v603
        %v655 = vunpack.c.l.b16 %v604
        %v656 = vunpack.c.l.b16 %v605
        %v657 = vunpack.c.l.b16 %v606
        %v658 = vunpack.c.l.b16 %v607
        %v659 = vunpack.c.l.b16 %v608
        %v660 = vunpack.c.l.b16 %v609
        %v661 = vunpack.c.l.b16 %v610
        %v662 = vunpack.c.l.b16 %v611
        %v663 = vunpack.c.l.b16 %v612
        %v664 = vunpack.c.l.b16 %v613
        %v665 = vunpack.c.l.b16 %v614
        %v666 = vunpack.c.l.b16 %v615
        %v667 = vpack.c.b16 %v652, %v651
        %v668 = vpack.c.b16 %v654, %v653
        %v669 = vpack.c.b16 %v656, %v655
        %v670 = vpack.c.b16 %v658, %v657
        %v671 = vpack.c.b16 %v660, %v659
        %v672 = vpack.c.b16 %v662, %v661
        %v673 = vpack.c.b16 %v664, %v663
        %v674 = vpack.c.b16 %v666, %v665
        %v699 = vunpack.c.l.b16 %v619
        %v700 = vunpack.c.l.b16 %v620
        %v701 = vunpack.c.l.b16 %v621
        %v702 = vunpack.c.l.b16 %v622
        %v703 = vunpack.c.l.b16 %v623
        %v704 = vunpack.c.l.b16 %v624
        %v705 = vunpack.c.l.b16 %v625
        %v706 = vunpack.c.l.b16 %v626
        %v707 = vunpack.c.l.b16 %v627
        %v708 = vunpack.c.l.b16 %v628
        %v709 = vunpack.c.l.b16 %v629
        %v710 = vunpack.c.l.b16 %v630
        %v711 = vunpack.c.l.b16 %v631
        %v712 = vunpack.c.l.b16 %v632
        %v713 = vunpack.c.l.b16 %v633
        %v714 = vunpack.c.l.b16 %v634
        %v715 = vpack.c.b16 %v700, %v699
        %v716 = vpack.c.b16 %v702, %v701
        %v717 = vpack.c.b16 %v704, %v703
        %v718 = vpack.c.b16 %v706, %v705
        %v719 = vpack.c.b16 %v708, %v707
        %v720 = vpack.c.b16 %v710, %v709
        %v721 = vpack.c.b16 %v712, %v711
        %v722 = vpack.c.b16 %v714, %v713
        %731 = vmatpush.bf16.msra.mxu0 %v722
        %732 = vmatpush.bf16.msra.mxu0 %v721
        %733 = vmatpush.bf16.msra.mxu0 %v720
        %734 = vmatpush.bf16.msra.mxu0 %v719
        %735 = vmatpush.bf16.msra.mxu0 %v718
        %736 = vmatpush.bf16.msra.mxu0 %v717
        %737 = vmatpush.bf16.msra.mxu0 %v716
        %738 = vmatpush.bf16.msra.mxu0 %v715
        %739 = vmatmul.bf16.gmra.mxu0 %v667
        %v740 = vpop.f32.mrf.mxu0
        %v741 = vadd.f32 0.0, %v740
        %v742 = vpop.f32.mrf.mxu0
        %v743 = vadd.f32 0.0, %v742
        %744 = vmatmul.bf16.gmra.mxu0 %v668
        %v745 = vpop.f32.mrf.mxu0
        %v746 = vadd.f32 0.0, %v745
        %v747 = vpop.f32.mrf.mxu0
        %v748 = vadd.f32 0.0, %v747
        %749 = vmatmul.bf16.gmra.mxu0 %v669
        %v750 = vpop.f32.mrf.mxu0
        %v751 = vadd.f32 0.0, %v750
        %v752 = vpop.f32.mrf.mxu0
        %v753 = vadd.f32 0.0, %v752
        %754 = vmatmul.bf16.gmra.mxu0 %v670
        %v755 = vpop.f32.mrf.mxu0
        %v756 = vadd.f32 0.0, %v755
        %v757 = vpop.f32.mrf.mxu0
        %v758 = vadd.f32 0.0, %v757
        %759 = vmatmul.bf16.gmra.mxu0 %v671
        %v760 = vpop.f32.mrf.mxu0
        %v761 = vadd.f32 0.0, %v760
        %v762 = vpop.f32.mrf.mxu0
        %v763 = vadd.f32 0.0, %v762
        %764 = vmatmul.bf16.gmra.mxu0 %v672
        %v765 = vpop.f32.mrf.mxu0
        %v766 = vadd.f32 0.0, %v765
        %v767 = vpop.f32.mrf.mxu0
        %v768 = vadd.f32 0.0, %v767
        %769 = vmatmul.bf16.gmra.mxu0 %v673
        %v770 = vpop.f32.mrf.mxu0
        %v771 = vadd.f32 0.0, %v770
        %v772 = vpop.f32.mrf.mxu0
        %v773 = vadd.f32 0.0, %v772
        %774 = vmatmul.bf16.gmra.mxu0 %v674
        %v775 = vpop.f32.mrf.mxu0
        %v776 = vadd.f32 0.0, %v775
        %v777 = vpop.f32.mrf.mxu0
        %v778 = vadd.f32 0.0, %v777
        %779 = vdwg.mxu0
        %v780 = vadd.f32 %v584, %v741
        %v781 = vadd.f32 %v585, %v743
        %v782 = vadd.f32 %v586, %v746
        %v783 = vadd.f32 %v587, %v748
        %v784 = vadd.f32 %v588, %v751
        %v785 = vadd.f32 %v589, %v753
        %v786 = vadd.f32 %v590, %v756
        %v787 = vadd.f32 %v591, %v758
        %v788 = vadd.f32 %v592, %v761
        %v789 = vadd.f32 %v593, %v763
        %v790 = vadd.f32 %v594, %v766
        %v791 = vadd.f32 %v595, %v768
        %v792 = vadd.f32 %v596, %v771
        %v793 = vadd.f32 %v597, %v773
        %v794 = vadd.f32 %v598, %v776
        %v795 = vadd.f32 %v599, %v778
        %796 = vst [vmem:[#allocation3] sm:$0xff] %v780
        %797 = vst [vmem:[#allocation3 + $0x8] sm:$0xff] %v781
        %798 = vst [vmem:[#allocation3 + $0x10] sm:$0xff] %v782
        %799 = vst [vmem:[#allocation3 + $0x18] sm:$0xff] %v783
        %800 = vst [vmem:[#allocation3 + $0x20] sm:$0xff] %v784
        %801 = vst [vmem:[#allocation3 + $0x28] sm:$0xff] %v785
        %802 = vst [vmem:[#allocation3 + $0x30] sm:$0xff] %v786
        %803 = vst [vmem:[#allocation3 + $0x38] sm:$0xff] %v787
        %804 = vst [vmem:[#allocation3 + $0x40] sm:$0xff] %v788
        %805 = vst [vmem:[#allocation3 + $0x48] sm:$0xff] %v789
        %806 = vst [vmem:[#allocation3 + $0x50] sm:$0xff] %v790
        %807 = vst [vmem:[#allocation3 + $0x58] sm:$0xff] %v791
        %808 = vst [vmem:[#allocation3 + $0x60] sm:$0xff] %v792
        %809 = vst [vmem:[#allocation3 + $0x68] sm:$0xff] %v793
        %810 = vst [vmem:[#allocation3 + $0x70] sm:$0xff] %v794
        %811 = vst [vmem:[#allocation3 + $0x78] sm:$0xff] %v795
        // Predicated region
        $region57: #{tpu_custom_call.1} parent=35 // pred_check
          %p812 = pneg %p564
        $region58: #{tpu_custom_call.1} parent=35 // pred_check_branch
          %814 = sbr.rel (%p812) target = $region60
        $region59: #{tpu_custom_call.1} parent=35 // pred_region
          %v815 = vld [vmem:[#allocation3] sm:$0xff]
          %v816 = vld [vmem:[#allocation3 + $0x8] sm:$0xff]
          %v817 = vld [vmem:[#allocation3 + $0x10] sm:$0xff]
          %v818 = vld [vmem:[#allocation3 + $0x18] sm:$0xff]
          %v819 = vld [vmem:[#allocation3 + $0x20] sm:$0xff]
          %v820 = vld [vmem:[#allocation3 + $0x28] sm:$0xff]
          %v821 = vld [vmem:[#allocation3 + $0x30] sm:$0xff]
          %v822 = vld [vmem:[#allocation3 + $0x38] sm:$0xff]
          %v823 = vld [vmem:[#allocation3 + $0x40] sm:$0xff]
          %v824 = vld [vmem:[#allocation3 + $0x48] sm:$0xff]
          %v825 = vld [vmem:[#allocation3 + $0x50] sm:$0xff]
          %v826 = vld [vmem:[#allocation3 + $0x58] sm:$0xff]
          %v827 = vld [vmem:[#allocation3 + $0x60] sm:$0xff]
          %v828 = vld [vmem:[#allocation3 + $0x68] sm:$0xff]
          %v829 = vld [vmem:[#allocation3 + $0x70] sm:$0xff]
          %v830 = vld [vmem:[#allocation3 + $0x78] sm:$0xff]
          %v831 = vld [vmem:[%s346] sm:$0x1]
          %v833 = vperm.slane %v831, 0
          %v835 = vadd.f32 %v815, %v833
          %v836 = vadd.f32 %v816, %v833
          %v837 = vadd.f32 %v817, %v833
          %v838 = vadd.f32 %v818, %v833
          %v839 = vadd.f32 %v819, %v833
          %v840 = vadd.f32 %v820, %v833
          %v841 = vadd.f32 %v821, %v833
          %v842 = vadd.f32 %v822, %v833
          %v843 = vadd.f32 %v823, %v833
          %v844 = vadd.f32 %v824, %v833
          %v845 = vadd.f32 %v825, %v833
          %v846 = vadd.f32 %v826, %v833
          %v847 = vadd.f32 %v827, %v833
          %v848 = vadd.f32 %v828, %v833
          %v849 = vadd.f32 %v829, %v833
          %v850 = vadd.f32 %v830, %v833
          %851 = vst [vmem:[%s341] sm:$0xff] %v835
          %852 = vst [vmem:[%s341 + $0x8] sm:$0xff] %v836
          %853 = vst [vmem:[%s341 + $0x10] sm:$0xff] %v837
          %854 = vst [vmem:[%s341 + $0x18] sm:$0xff] %v838
          %855 = vst [vmem:[%s341 + $0x20] sm:$0xff] %v839
          %856 = vst [vmem:[%s341 + $0x28] sm:$0xff] %v840
          %857 = vst [vmem:[%s341 + $0x30] sm:$0xff] %v841
          %858 = vst [vmem:[%s341 + $0x38] sm:$0xff] %v842
          %859 = vst [vmem:[%s341 + $0x40] sm:$0xff] %v843
          %860 = vst [vmem:[%s341 + $0x48] sm:$0xff] %v844
          %861 = vst [vmem:[%s341 + $0x50] sm:$0xff] %v845
          %862 = vst [vmem:[%s341 + $0x58] sm:$0xff] %v846
          %863 = vst [vmem:[%s341 + $0x60] sm:$0xff] %v847
          %864 = vst [vmem:[%s341 + $0x68] sm:$0xff] %v848
          %865 = vst [vmem:[%s341 + $0x70] sm:$0xff] %v849
          %866 = vst [vmem:[%s341 + $0x78] sm:$0xff] %v850
        $region60: #{tpu_custom_call.1} parent=35 // pred_fallthru
          _
        %s867 = sand.u32 %s163, 1
        %s868 = scalar_lea.sflag [#allocation6], %s867
        %s869 = sand.u32 %s163, 1
        %s870 = smul.addr %s869, 128
        %s871 = scalar_lea.vmem [#allocation10], %s870
        // Predicated region
        $region61: #{tpu_custom_call.1} parent=35 // pred_check
          %p872 = pneg %p173
        $region62: #{tpu_custom_call.1} parent=35 // pred_check_branch
          %874 = sbr.rel (%p872) target = $region64
        $region63: #{tpu_custom_call.1} parent=35 // pred_region
          %s875 = smul.u32 16, %s30
          %877 = vsyncadd %s868, 0
          %s878 = smul.addr %s29, 16
          %s879 = sadd.s32 %s875, %s878
          %s880 = smul.addr %s879, 8
          %s881 = scalar_lea.hbm %s4, %s880
          %s882 = sshll.u32 %s871, 4
          %s883 = int_to_ptr.vmem [resolvable:$true] %s882
          %s884 = sshll.u32 %s881, 4
          %s885 = int_to_ptr.hbm [resolvable:$true] %s884
          %890 = dma.vmem_to_hbm [thread:$0]  %s883, 2048, %s885, %s868, 128, 128, 8
        $region64: #{tpu_custom_call.1} parent=35 // pred_fallthru
          _
      $region36: #{tpu_custom_call.1} parent=5 // pred_fallthru
        _
      %p891 = scmp.le.s32.totalorder 2, %s19
      // Predicated region
      $region65: #{tpu_custom_call.1} parent=5 // pred_check
        %p892 = pneg %p891
      $region66: #{tpu_custom_call.1} parent=5 // pred_check_branch
        %894 = sbr.rel (%p892) target = $region68
      $region67: #{tpu_custom_call.1} parent=5 // pred_region
        %s895 = ssub.s32 %s19, 2
        // Predicated region
        $region69: #{tpu_custom_call.1} parent=67 // pred_check
          %p896 = pneg %p179
        $region70: #{tpu_custom_call.1} parent=67 // pred_check_branch
          %898 = sbr.rel (%p896) target = $region72
        $region71: #{tpu_custom_call.1} parent=67 // pred_region
          %s899 = sand.u32 %s164, 1
          %s900 = scalar_lea.sflag [#allocation6], %s899
          %s901 = sand.u32 %s164, 1
          %s902 = smul.addr %s901, 128
          %s903 = scalar_lea.vmem [#allocation10], %s902
          %905 = dma.done %s900, 2048
        $region72: #{tpu_custom_call.1} parent=67 // pred_fallthru
          _
      $region68: #{tpu_custom_call.1} parent=5 // pred_fallthru
        _
    $region6: #{tpu_custom_call.1} parent=1 // loop_footer
      %s23 = sadd.s32 1, %s19
    $region7: #{tpu_custom_call.1} parent=1 // loop_footer_branch
      %18 = sbr.rel target = $region3
    $region8: #{tpu_custom_call.1} parent=1 // loop_exit
      _
    %906 = vsyncpa [#allocation5], 1
    %s907 = scalar_lea.sflag [#allocation5], 1
    %908 = vsyncpa %s907, 1
    %909 = vsyncpa [#allocation8], 1
    %s910 = scalar_lea.sflag [#allocation8], 1
    %911 = vsyncpa %s910, 1
    %912 = vsyncpa [#allocation6], 1
    %s913 = scalar_lea.sflag [#allocation6], 1
    %914 = vsyncpa %s913, 1

</llo_original>
